<compile_context>
chip_gen: v7x
topology: tpu7x:2x2x1
jax: 0.10.0
libtpu: 0.0.40
codegen_flags: <defaults>
</compile_context>

<pallas_src>
import functools

import jax
import jax.numpy as jnp
from jax.experimental import pallas as pl
from jax.experimental.pallas import tpu as pltpu


def _pick_tile(n, target):
    """Largest multiple of 128 that divides n and is <= target."""
    t = min(int(target), n)
    t -= t % 128
    t = max(t, 128)
    while n % t:
        t -= 128
    return t


def _device_config():
    """Generation-aware defaults (safe fallbacks if introspection fails)."""
    kind = ""
    try:
        kind = jax.devices()[0].device_kind.lower()
    except Exception:
        pass
    is_v5e = ("v5 lite" in kind) or ("v5e" in kind) or ("v5litepod" in kind)

    phys_vmem = None
    try:
        phys_vmem = int(pltpu.get_tpu_info().vmem_capacity_bytes)
    except Exception:
        phys_vmem = None
    if not phys_vmem or phys_vmem <= 0:
        # Conservative: assume v7x-sized VMEM unless we know it's a 128 MiB part.
        phys_vmem = (128 if is_v5e else 64) * 1024 * 1024

    # Leave ~25% headroom for pipeline buffers / semaphores / compiler scratch.
    budget = (phys_vmem * 3) // 4
    big = budget >= 80 * 1024 * 1024   # v5e / v6e (128 MiB physical)
    return dict(
        score_dtype=jnp.float32 if is_v5e else jnp.bfloat16,
        tile_i=1024 if big else 512,
        tile_j=2048 if big else 1024,
        vmem_budget=int(budget),
    )


def _pad128(c):
    return -(-int(c) // 128) * 128


def _attn_vmem_estimate(N, fout, tile_i, tile_j):
    """Lane-padded VMEM estimate for the attention kernel (bytes)."""
    adj_b = 2 * tile_i * tile_j                    # int8 adj tile, double-buffered
    haug_b = 2 * N * _pad128(fout + 1) * 2         # resident bf16 [h|1], 2 buffers
    acc_b = tile_i * _pad128(fout + 1) * 4         # f32 accumulator scratch
    s1_b = 2 * tile_i * 128 * 4                    # (tile_i, 1) -> 128 lanes
    s2_b = 2 * 8 * tile_j * 4                      # (1, tile_j) -> 8 sublanes
    out_b = 2 * tile_i * _pad128(fout) * 4         # f32 output block
    return adj_b + haug_b + acc_b + s1_b + s2_b + out_b


def _fit_tiles(N, fout, tile_i, tile_j, budget):
    while _attn_vmem_estimate(N, fout, tile_i, tile_j) > budget and tile_j > 128:
        tile_j = _pick_tile(N, tile_j - 128)
    while _attn_vmem_estimate(N, fout, tile_i, tile_j) > budget and tile_i > 128:
        tile_i = _pick_tile(N, tile_i - 128)
    return tile_i, tile_j, _attn_vmem_estimate(N, fout, tile_i, tile_j)


# ---------------------------------------------------------------------------
# Kernel 1: fused node-feature transform + attention score projections.
#   xh    = x @ [W | W@a_src | W@a_dst]     (one MXU matmul)
#   h_aug = [xh[:, :F] | 1]   (bf16; ones column so the attention kernel's MXU
#                              matmul also produces the row-sum)
#   s1    = xh[:, F]          s2 = xh[:, F+1]
# ---------------------------------------------------------------------------
def _prep_kernel(x_ref, waug_ref, haug_ref, s1_ref, s2_ref, *, fout):
    xh = jnp.dot(x_ref[...], waug_ref[...], preferred_element_type=jnp.float32)
    s1_ref[...] = xh[:, fout:fout + 1]
    s2_ref[...] = xh[:, fout + 1:fout + 2]
    h = xh[:, :fout]
    ones = jnp.ones((h.shape[0], 1), dtype=jnp.float32)
    # Single full-width store (no masked partial-column stores).
    haug_ref[...] = jnp.concatenate([h, ones], axis=-1).astype(haug_ref.dtype)


def _prep(x, w_aug, *, fout, tile_n):
    N, Fin = x.shape
    width = w_aug.shape[1]   # fout + 2
    kernel = functools.partial(_prep_kernel, fout=fout)
    return pl.pallas_call(
        kernel,
        out_shape=(
            jax.ShapeDtypeStruct((N, fout + 1), jnp.bfloat16),   # [h | 1] (bf16)
            jax.ShapeDtypeStruct((N, 1), jnp.float32),           # s1
            jax.ShapeDtypeStruct((N, 1), jnp.float32),           # s2 (column)
        ),
        grid_spec=pltpu.PrefetchScalarGridSpec(
            num_scalar_prefetch=0,
            grid=(N // tile_n,),
            in_specs=[
                pl.BlockSpec((tile_n, Fin), lambda i: (i, 0)),
                pl.BlockSpec((Fin, width), lambda i: (0, 0)),
            ],
            out_specs=(
                pl.BlockSpec((tile_n, fout + 1), lambda i: (i, 0)),
                pl.BlockSpec((tile_n, 1), lambda i: (i, 0)),
                pl.BlockSpec((tile_n, 1), lambda i: (i, 0)),
            ),
        ),
        compiler_params=pltpu.CompilerParams(
            dimension_semantics=("parallel",)),
    )(x, w_aug)


# ---------------------------------------------------------------------------
# Kernel 2: fused attention + sparse aggregation + row normalization + ELU.
# Grid: (row tiles, column-block steps); column axis is the reduction axis.
# Scalar prefetch: block_ids[i, j] = j-th column block with edges for row tile
# i (non-empty blocks first, padding repeats the last non-empty block), and
# counts[i] = number of non-empty column blocks.
# Per visited (i, block) tile:
#   e    = where(adj != 0, exp(-leakyrelu(s1_i + s2_j)), 0)   (VPU / EUP)
#   acc += e @ [h_cols | 1]  (bf16 MXU; last column accumulates the row-sum)
# On the last step: out = ELU(acc[:, :F] * 1/acc[:, F]).
# h_aug stays VMEM-resident for the whole kernel (constant index_map).
# ---------------------------------------------------------------------------
def _gat_attn_kernel(bid_ref, cnt_ref, adj_ref, s1_ref, s2_ref, haug_ref,
                     out_ref, acc_ref, *, alpha, concat, fout, tile_j,
                     score_dtype):
    i = pl.program_id(0)
    j = pl.program_id(1)

    @pl.when(j == 0)
    def _():
        acc_ref[...] = jnp.zeros_like(acc_ref)

    @pl.when(j < cnt_ref[i])
    def _():
        s1 = s1_ref[...].astype(score_dtype)          # (TI, 1)
        s2 = s2_ref[...].astype(score_dtype)          # (1, TJ)
        logits = s1 + s2                              # (TI, TJ)
        lrelu = jnp.where(logits >= 0, logits, alpha * logits)   # LeakyReLU(alpha)
        # Select-mask: non-edges may compute inf in exp but are selected away
        # (no inf*0 NaN), exactly matching the reference math.  Cast to bf16
        # so the MXU runs its native bf16 path.
        e = jnp.where(adj_ref[...] != 0, jnp.exp(-lrelu), 0.0)
        e = e.astype(jnp.bfloat16)

        # Column block of the resident augmented h (bf16); the ones column
        # makes the MXU matmul also accumulate the row-sum into acc[:, fout].
        col_blk = bid_ref[i, j]
        start = pl.multiple_of(col_blk * tile_j, tile_j)
        h_cols = haug_ref[pl.ds(start, tile_j), :]
        acc_ref[...] += jnp.dot(e, h_cols, preferred_element_type=jnp.float32)

    @pl.when(j == pl.num_programs(1) - 1)
    def _():
        acc = acc_ref[...]
        num = acc[:, :fout]                  # sum_j e_ij * h_j
        den = acc[:, fout:fout + 1]          # sum_j e_ij
        h_prime = num * pl.reciprocal(den, approx=True)
        if concat:
            # ELU(alpha=1): x if x > 0 else exp(x) - 1
            h_prime = jnp.where(h_prime > 0, h_prime, jnp.exp(h_prime) - 1.0)
        out_ref[...] = h_prime.astype(out_ref.dtype)


def sp_graph_attention_layer(x, adj, W, a, *, alpha, concat=True,
                             tile_i=None, tile_j=None, score_dtype=None):
    """Forward pass of SpGraphAttentionLayer.

    adj should be an int8/bool 0-1 mask (a full conversion pass is done here
    only as a fallback).  score_dtype defaults to bfloat16 except on v5e.
    """
    N, _ = x.shape
    Fout = W.shape[1]
    assert adj.shape == (N, N)
    assert N % 128 == 0, "pad the node count to a multiple of 128"

    cfg = _device_config()
    if score_dtype is None:
        score_dtype = cfg["score_dtype"]
    tile_i = _pick_tile(N, cfg["tile_i"] if tile_i is None else tile_i)
    tile_j = _pick_tile(N, cfg["tile_j"] if tile_j is None else tile_j)
    tile_i, tile_j, vmem_est = _fit_tiles(N, Fout, tile_i, tile_j,
                                          cfg["vmem_budget"])

    # Attention parameter split folded into the main matmul:
    #   a @ [h_i; h_j] = h_i . a_src + h_j . a_dst,  x @ (W @ a_*) == h @ a_*
    a = a.astype(jnp.float32)
    W = W.astype(jnp.float32)
    a_src = a[0, :Fout].reshape(Fout, 1)
    a_dst = a[0, Fout:].reshape(Fout, 1)
    w_aug = jnp.concatenate([W, W @ a_src, W @ a_dst], axis=1)   # (Fin, Fout+2)

    # Fused h_aug = [h | 1] (bf16), s1, s2 — one kernel, one MXU matmul.
    h_aug, s1, s2_col = _prep(x.astype(jnp.float32), w_aug, fout=Fout,
                              tile_n=_pick_tile(N, 1024))
    s2 = s2_col.reshape(1, N)   # row-major reshape of an (N, 1) vector: free

    # adj at the API boundary should already be int8/bool (conversion here is
    # an extra full N^2 HBM pass — avoid it for repeated calls / heads).
    if adj.dtype == jnp.int8:
        adj_i8 = adj
    else:
        adj_i8 = (adj != 0).astype(jnp.int8)

    # Block-sparsity map for scalar prefetch: per row tile, the column blocks
    # that contain at least one edge (non-empty first, in ascending order);
    # padding entries repeat the last non-empty block so their DMA is elided
    # and the compute is skipped in-kernel.
    nbi, nbj = N // tile_i, N // tile_j
    blk_nz = (adj_i8 != 0).reshape(nbi, tile_i, nbj, tile_j).any(axis=(1, 3))
    counts = blk_nz.sum(axis=-1, dtype=jnp.int32)                     # (nbi,)
    order = jnp.argsort((~blk_nz).astype(jnp.int32), axis=-1).astype(jnp.int32)
    last = order[jnp.arange(nbi), jnp.maximum(counts - 1, 0)]
    col_pos = jnp.arange(nbj, dtype=jnp.int32)[None, :]
    block_ids = jnp.where(col_pos < counts[:, None], order, last[:, None])

    kernel = functools.partial(_gat_attn_kernel, alpha=float(alpha),
                               concat=concat, fout=Fout, tile_j=tile_j,
                               score_dtype=score_dtype)

    vmem_limit = int(min(max(int(vmem_est * 1.25), 16 * 1024 * 1024),
                         cfg["vmem_budget"]))

    return pl.pallas_call(
        kernel,
        out_shape=jax.ShapeDtypeStruct((N, Fout), jnp.float32),
        grid_spec=pltpu.PrefetchScalarGridSpec(
            num_scalar_prefetch=2,
            grid=(nbi, nbj),
            in_specs=[
                # adj tile of the selected column block (int8: 4x less HBM).
                pl.BlockSpec((tile_i, tile_j),
                             lambda i, j, bid, cnt: (i, bid[i, j])),
                # s1 rows for this row tile.
                pl.BlockSpec((tile_i, 1), lambda i, j, bid, cnt: (i, 0)),
                # s2 columns for the selected column block.
                pl.BlockSpec((1, tile_j),
                             lambda i, j, bid, cnt: (0, bid[i, j])),
                # Resident augmented h (bf16), constant index_map.
                pl.BlockSpec((N, Fout + 1), lambda i, j, bid, cnt: (0, 0)),
            ],
            out_specs=pl.BlockSpec((tile_i, Fout),
                                   lambda i, j, bid, cnt: (i, 0)),
            scratch_shapes=[pltpu.VMEM((tile_i, Fout + 1), jnp.float32)],
        ),
        compiler_params=pltpu.CompilerParams(
            dimension_semantics=("parallel", "arbitrary"),
            vmem_limit_bytes=vmem_limit),
    )(block_ids, counts, adj_i8, s1, s2, h_aug)


# ---------------------------------------------------------------------------
# Pure-JAX reference for correctness checking.
# ---------------------------------------------------------------------------
def _reference(x, adj, W, a, alpha, concat):
    h = x @ W
    Fout = W.shape[1]
    s1 = h @ a[0, :Fout]
    s2 = h @ a[0, Fout:]
    logits = s1[:, None] + s2[None, :]
    lrelu = jnp.where(logits >= 0, logits, alpha * logits)
    e = jnp.exp(-lrelu) * (adj != 0).astype(jnp.float32)
    rowsum = e.sum(-1, keepdims=True)
    h_prime = (e @ h) / rowsum
    if concat:
        h_prime = jnp.where(h_prime > 0, h_prime, jnp.exp(h_prime) - 1.0)
    return h_prime


def _xavier_normal(key, shape, gain):
    fan_in, fan_out = shape
    std = gain * (2.0 / (fan_in + fan_out)) ** 0.5
    return std * jax.random.normal(key, shape, dtype=jnp.float32)


if __name__ == "__main__":
    # Module hyper-parameters (SpGraphAttentionLayer(in, out, dropout, alpha)).
    N = 256            # number of graph nodes
    in_features = 16
    out_features = 32
    alpha = 0.2        # LeakyReLU negative slope
    concat = True

    key = jax.random.PRNGKey(0)
    k_x, k_adj, k_w, k_a, k_x2, k_adj2 = jax.random.split(key, 6)

    # Deterministic parameters (xavier_normal_, gain=1.414), as in __init__.
    W = _xavier_normal(k_w, (in_features, out_features), gain=1.414)
    a = _xavier_normal(k_a, (1, 2 * out_features), gain=1.414)

    # Inputs: node features + sparse adjacency as an int8 0/1 mask, with
    # self-loops so every row has at least one edge (matches the module's
    # no-NaN assertion).
    x = jax.random.normal(k_x, (N, in_features), dtype=jnp.float32)
    adj = (jax.random.bernoulli(k_adj, p=0.05, shape=(N, N))
           | jnp.eye(N, dtype=bool)).astype(jnp.int8)

    ref = _reference(x, adj, W, a, alpha, concat)

    # Tolerance covers bf16 h / bf16 attention weights fed to the MXU, the
    # approximate EUP reciprocal, and MXU accumulation-order differences;
    # structural math errors would be O(1).
    TOL = 3e-2

    # 1) Default (device-sized) tiles — single grid step at this toy size.
    out = sp_graph_attention_layer(x, adj, W, a, alpha=alpha, concat=concat)
    out = jax.block_until_ready(out)
    assert out.shape == (N, out_features)
    assert jnp.all(jnp.isfinite(out))
    assert jnp.allclose(out, ref, atol=TOL, rtol=TOL), \
        float(jnp.max(jnp.abs(out - ref)))

    # 2) Small tiles — exercises the multi-step reduction over column blocks
    #    and a megacore-friendly multi-row-tile grid.
    out2 = sp_graph_attention_layer(x, adj, W, a, alpha=alpha, concat=concat,
                                    tile_i=128, tile_j=128)
    out2 = jax.block_until_ready(out2)
    assert jnp.allclose(out2, ref, atol=TOL, rtol=TOL), \
        float(jnp.max(jnp.abs(out2 - ref)))

    # 3) Genuinely block-sparse adjacency (block-diagonal) — exercises the
    #    scalar-prefetched column-block skip path (padding steps skipped).
    N2 = 512
    x2 = jax.random.normal(k_x2, (N2, in_features), dtype=jnp.float32)
    rows = jnp.arange(N2) // 128
    block_mask = rows[:, None] == rows[None, :]
    adj2 = ((jax.random.bernoulli(k_adj2, p=0.10, shape=(N2, N2)) & block_mask)
            | jnp.eye(N2, dtype=bool)).astype(jnp.int8)
    ref2 = _reference(x2, adj2, W, a, alpha, concat)
    out3 = sp_graph_attention_layer(x2, adj2, W, a, alpha=alpha, concat=concat,
                                    tile_i=128, tile_j=128)
    out3 = jax.block_until_ready(out3)
    assert jnp.all(jnp.isfinite(out3))
    assert jnp.allclose(out3, ref2, atol=TOL, rtol=TOL), \
        float(jnp.max(jnp.abs(out3 - ref2)))

    print("KERNEL_OK")
</pallas_src>

<mosaic_0001>
module attributes {stable_mosaic.version = 11 : i64} {
  func.func @_prep_kernel(%arg0: i32, %arg1: memref<256x16xf32, #tpu.memory_space<vmem>>, %arg2: memref<16x34xf32, #tpu.memory_space<vmem>>, %arg3: memref<256x33xbf16, #tpu.memory_space<vmem>>, %arg4: memref<256x1xf32, #tpu.memory_space<vmem>>, %arg5: memref<256x1xf32, #tpu.memory_space<vmem>>) attributes {dimension_semantics = [#tpu.dimension_semantics<parallel>], iteration_bounds = array<i64: 1>, scalar_prefetch = 0 : i64, scratch_operands = 0 : i64, tpu.core_type = #tpu.core_type<tc>, window_params = [{transform_indices = @transform_0, window_bounds = array<i64: 256, 16>}, {pipeline_mode = #tpu.pipeline_mode<synchronous>, transform_indices = @transform_1, window_bounds = array<i64: 16, 34>}, {transform_indices = @transform_2, window_bounds = array<i64: 256, 33>}, {transform_indices = @transform_3, window_bounds = array<i64: 256, 1>}, {transform_indices = @transform_4, window_bounds = array<i64: 256, 1>}]} {
    %c0 = arith.constant 0 : index
    %c0_0 = arith.constant 0 : index
    %0 = vector.load %arg1[%c0, %c0_0] : memref<256x16xf32, #tpu.memory_space<vmem>>, vector<256x16xf32>
    %c0_1 = arith.constant 0 : index
    %c0_2 = arith.constant 0 : index
    %1 = vector.load %arg2[%c0_1, %c0_2] : memref<16x34xf32, #tpu.memory_space<vmem>>, vector<16x34xf32>
    %cst = arith.constant dense<0.000000e+00> : vector<256x34xf32>
    %2 = tpu.matmul %0, %1, %cst {dimension_numbers = #tpu.dot_dimension_numbers<[1], [0], [0], [1], [0, 0, 1, 1], [], []>} : vector<256x16xf32>, vector<16x34xf32>, vector<256x34xf32> -> vector<256x34xf32>
    %3 = vector.extract_strided_slice %2 {offsets = [0, 32], sizes = [256, 1], strides = [1, 1]} : vector<256x34xf32> to vector<256x1xf32>
    %c0_3 = arith.constant 0 : index
    %c0_4 = arith.constant 0 : index
    %4 = vector.load %arg4[%c0_3, %c0_4] : memref<256x1xf32, #tpu.memory_space<vmem>>, vector<256x1xf32>
    tpu.vector_store %arg4[%c0_3, %c0_4], %3 {strides = array<i32>} : memref<256x1xf32, #tpu.memory_space<vmem>>, vector<256x1xf32>,
    %5 = vector.extract_strided_slice %2 {offsets = [0, 33], sizes = [256, 1], strides = [1, 1]} : vector<256x34xf32> to vector<256x1xf32>
    %c0_5 = arith.constant 0 : index
    %c0_6 = arith.constant 0 : index
    %6 = vector.load %arg5[%c0_5, %c0_6] : memref<256x1xf32, #tpu.memory_space<vmem>>, vector<256x1xf32>
    tpu.vector_store %arg5[%c0_5, %c0_6], %5 {strides = array<i32>} : memref<256x1xf32, #tpu.memory_space<vmem>>, vector<256x1xf32>,
    %7 = vector.extract_strided_slice %2 {offsets = [0, 0], sizes = [256, 32], strides = [1, 1]} : vector<256x34xf32> to vector<256x32xf32>
    %cst_7 = arith.constant 1.000000e+00 : f32
    %8 = vector.broadcast %cst_7 : f32 to vector<256x1xf32>
    %9 = tpu.concatenate %7, %8 in 1 : vector<256x32xf32>, vector<256x1xf32> -> vector<256x33xf32>
    %10 = arith.truncf %9 : vector<256x33xf32> to vector<256x33xbf16>
    %c0_8 = arith.constant 0 : index
    %c0_9 = arith.constant 0 : index
    %11 = vector.load %arg3[%c0_8, %c0_9] : memref<256x33xbf16, #tpu.memory_space<vmem>>, vector<256x33xbf16>
    tpu.vector_store %arg3[%c0_8, %c0_9], %10 {strides = array<i32>} : memref<256x33xbf16, #tpu.memory_space<vmem>>, vector<256x33xbf16>,
    return
  }
  func.func @transform_0(%arg0: i32) -> (i32, i32) {
    %c0_i32 = arith.constant 0 : i32
    %c0_i32_0 = arith.constant 0 : i32
    return %arg0, %c0_i32 : i32, i32
  }
  func.func @transform_1(%arg0: i32) -> (i32, i32) {
    %c0_i32 = arith.constant 0 : i32
    %c0_i32_0 = arith.constant 0 : i32
    %c0_i32_1 = arith.constant 0 : i32
    return %c0_i32, %c0_i32_0 : i32, i32
  }
  func.func @transform_2(%arg0: i32) -> (i32, i32) {
    %c0_i32 = arith.constant 0 : i32
    %c0_i32_0 = arith.constant 0 : i32
    return %arg0, %c0_i32 : i32, i32
  }
  func.func @transform_3(%arg0: i32) -> (i32, i32) {
    %c0_i32 = arith.constant 0 : i32
    %c0_i32_0 = arith.constant 0 : i32
    return %arg0, %c0_i32 : i32, i32
  }
  func.func @transform_4(%arg0: i32) -> (i32, i32) {
    %c0_i32 = arith.constant 0 : i32
    %c0_i32_0 = arith.constant 0 : i32
    return %arg0, %c0_i32 : i32, i32
  }
}

</mosaic_0001>

<llo_original>
// kernel: tpu_custom_call.1
$region0: #{tpu_custom_call.1}
  #allocation0 [shape = 'u32[]', space=smem, size = 0x4, offset = 0x4, fixed_abs, tag = 'smem constant byte address 0x4 - core index']
  #allocation1 [shape = 'u32[144,128]{1,0:T(1,128)}', space=vmem, size = 0x12000, scoped, tag = 'internal scratch']
  %s0 = inlined_call_operand.vmem [shape: f32[256,16], index: 0, kind: input, shape index: {}]
  %s1 = inlined_call_operand.vmem [shape: f32[16,34], index: 1, kind: input, shape index: {}]
  %s2 = inlined_call_operand.vmem [shape: bf16[256,33], index: 2, kind: output, shape index: {0}]
  %s3 = inlined_call_operand.vmem [shape: f32[256,1], index: 3, kind: output, shape index: {1}]
  %s4 = inlined_call_operand.vmem [shape: f32[256,1], index: 4, kind: output, shape index: {2}]
  %5 = xla_tuple %s2, %s3, %s4
  %s6 = sld [smem:[#allocation0]]
  $region34: #{tpu_custom_call.1} parent=0
    _
  %s8 = ssub.s32 1, %s6
  %s9 = scalar_select 0, %s8, %s6
  // Predicated region
  $region2: #{tpu_custom_call.1} parent=0 // pred_check
    _
  $region3: #{tpu_custom_call.1} parent=0 // pred_check_branch
    %11 = sbr.rel (0) target = $region5
  $region4: #{tpu_custom_call.1} parent=0 // pred_region
    _
  $region5: #{tpu_custom_call.1} parent=0 // pred_fallthru
    _
  // Predicated region
  $region6: #{tpu_custom_call.1} parent=0 // pred_check
    _
  $region7: #{tpu_custom_call.1} parent=0 // pred_check_branch
    %13 = sbr.rel (0) target = $region9
  $region8: #{tpu_custom_call.1} parent=0 // pred_region
    _
  $region9: #{tpu_custom_call.1} parent=0 // pred_fallthru
    _
  %v14 = vld [vmem:[%s0] sm:$0xff]
  %v15 = vld [vmem:[%s0 + $0x8] sm:$0xff]
  %v16 = vld [vmem:[%s0 + $0x10] sm:$0xff]
  %v17 = vld [vmem:[%s0 + $0x18] sm:$0xff]
  %v18 = vld [vmem:[%s0 + $0x20] sm:$0xff]
  %v19 = vld [vmem:[%s0 + $0x28] sm:$0xff]
  %v20 = vld [vmem:[%s0 + $0x30] sm:$0xff]
  %v21 = vld [vmem:[%s0 + $0x38] sm:$0xff]
  %v22 = vld [vmem:[%s0 + $0x40] sm:$0xff]
  %v23 = vld [vmem:[%s0 + $0x48] sm:$0xff]
  %v24 = vld [vmem:[%s0 + $0x50] sm:$0xff]
  %v25 = vld [vmem:[%s0 + $0x58] sm:$0xff]
  %v26 = vld [vmem:[%s0 + $0x60] sm:$0xff]
  %v27 = vld [vmem:[%s0 + $0x68] sm:$0xff]
  %v28 = vld [vmem:[%s0 + $0x70] sm:$0xff]
  %v29 = vld [vmem:[%s0 + $0x78] sm:$0xff]
  %v30 = vld [vmem:[%s0 + $0x80] sm:$0xff]
  %v31 = vld [vmem:[%s0 + $0x88] sm:$0xff]
  %v32 = vld [vmem:[%s0 + $0x90] sm:$0xff]
  %v33 = vld [vmem:[%s0 + $0x98] sm:$0xff]
  %v34 = vld [vmem:[%s0 + $0xa0] sm:$0xff]
  %v35 = vld [vmem:[%s0 + $0xa8] sm:$0xff]
  %v36 = vld [vmem:[%s0 + $0xb0] sm:$0xff]
  %v37 = vld [vmem:[%s0 + $0xb8] sm:$0xff]
  %v38 = vld [vmem:[%s0 + $0xc0] sm:$0xff]
  %v39 = vld [vmem:[%s0 + $0xc8] sm:$0xff]
  %v40 = vld [vmem:[%s0 + $0xd0] sm:$0xff]
  %v41 = vld [vmem:[%s0 + $0xd8] sm:$0xff]
  %v42 = vld [vmem:[%s0 + $0xe0] sm:$0xff]
  %v43 = vld [vmem:[%s0 + $0xe8] sm:$0xff]
  %v44 = vld [vmem:[%s0 + $0xf0] sm:$0xff]
  %v45 = vld [vmem:[%s0 + $0xf8] sm:$0xff]
  %v46 = vld [vmem:[%s1] sm:$0xff]
  %v47 = vld [vmem:[%s1 + $0x8] sm:$0xff]
  %vm48 = vcmask 130048
  %v50 = vsel %vm48, %v14, 0
  %v53 = vsel %vm48, %v15, 0
  %v56 = vsel %vm48, %v16, 0
  %v59 = vsel %vm48, %v17, 0
  %v62 = vsel %vm48, %v18, 0
  %v65 = vsel %vm48, %v19, 0
  %v68 = vsel %vm48, %v20, 0
  %v71 = vsel %vm48, %v21, 0
  %v74 = vsel %vm48, %v22, 0
  %v77 = vsel %vm48, %v23, 0
  %v80 = vsel %vm48, %v24, 0
  %v83 = vsel %vm48, %v25, 0
  %v86 = vsel %vm48, %v26, 0
  %v89 = vsel %vm48, %v27, 0
  %v92 = vsel %vm48, %v28, 0
  %v95 = vsel %vm48, %v29, 0
  %v98 = vsel %vm48, %v30, 0
  %v101 = vsel %vm48, %v31, 0
  %v104 = vsel %vm48, %v32, 0
  %v107 = vsel %vm48, %v33, 0
  %v110 = vsel %vm48, %v34, 0
  %v113 = vsel %vm48, %v35, 0
  %v116 = vsel %vm48, %v36, 0
  %v119 = vsel %vm48, %v37, 0
  %v122 = vsel %vm48, %v38, 0
  %v125 = vsel %vm48, %v39, 0
  %v128 = vsel %vm48, %v40, 0
  %v131 = vsel %vm48, %v41, 0
  %v134 = vsel %vm48, %v42, 0
  %v137 = vsel %vm48, %v43, 0
  %v140 = vsel %vm48, %v44, 0
  %v143 = vsel %vm48, %v45, 0
  %145 = vmatprep.subr.mxu0 0.0
  %146 = vmatpush1.msra.mxu0 %v46
  %147 = vmatprep.subr.mxu0 0.0
  %148 = vmatpush1.msra.mxu0 %v47
  %149 = vmatprep.subr.mxu0 0.0
  %150 = vmatpush1.msra.mxu0 0.0
  %151 = vmatprep.subr.mxu0 0.0
  %152 = vmatpush1.msra.mxu0 0.0
  %153 = vmatprep.subr.mxu0 0.0
  %154 = vmatpush1.msra.mxu0 0.0
  %155 = vmatprep.subr.mxu0 0.0
  %156 = vmatpush1.msra.mxu0 0.0
  %157 = vmatprep.subr.mxu0 0.0
  %158 = vmatpush1.msra.mxu0 0.0
  %159 = vmatprep.subr.mxu0 0.0
  %160 = vmatpush1.msra.mxu0 0.0
  %161 = vmatprep.subr.mxu0 0.0
  %162 = vmatpush1.msra.mxu0 0.0
  %163 = vmatprep.subr.mxu0 0.0
  %164 = vmatpush1.msra.mxu0 0.0
  %165 = vmatprep.subr.mxu0 0.0
  %166 = vmatpush1.msra.mxu0 0.0
  %167 = vmatprep.subr.mxu0 0.0
  %168 = vmatpush1.msra.mxu0 0.0
  %169 = vmatprep.subr.mxu0 0.0
  %170 = vmatpush1.msra.mxu0 0.0
  %171 = vmatprep.subr.mxu0 0.0
  %172 = vmatpush1.msra.mxu0 0.0
  %173 = vmatprep.subr.mxu0 0.0
  %174 = vmatpush1.msra.mxu0 0.0
  %175 = vmatprep.subr.mxu0 0.0
  %176 = vmatpush1.msra.mxu0 0.0
  %177 = vmatprep.subr.mxu0 0.0
  %178 = vmatpush1.msra.mxu0 0.0
  %179 = vmatprep.subr.mxu0 0.0
  %180 = vmatpush1.msra.mxu0 0.0
  %181 = vmatprep.subr.mxu0 0.0
  %182 = vmatpush1.msra.mxu0 0.0
  %183 = vmatprep.subr.mxu0 0.0
  %184 = vmatpush1.msra.mxu0 0.0
  %185 = vmatprep.subr.mxu0 0.0
  %186 = vmatpush1.msra.mxu0 0.0
  %187 = vmatprep.subr.mxu0 0.0
  %188 = vmatpush1.msra.mxu0 0.0
  %189 = vmatprep.subr.mxu0 0.0
  %190 = vmatpush1.msra.mxu0 0.0
  %191 = vmatprep.subr.mxu0 0.0
  %192 = vmatpush1.msra.mxu0 0.0
  %193 = vmatprep.subr.mxu0 0.0
  %194 = vmatpush1.msra.mxu0 0.0
  %195 = vmatprep.subr.mxu0 0.0
  %196 = vmatpush1.msra.mxu0 0.0
  %197 = vmatprep.subr.mxu0 0.0
  %198 = vmatpush1.msra.mxu0 0.0
  %199 = vmatprep.subr.mxu0 0.0
  %200 = vmatpush1.msra.mxu0 0.0
  %201 = vmatprep.subr.mxu0 0.0
  %202 = vmatpush1.msra.mxu0 0.0
  %203 = vmatprep.subr.mxu0 0.0
  %204 = vmatpush1.msra.mxu0 0.0
  %205 = vmatprep.subr.mxu0 0.0
  %206 = vmatpush1.msra.mxu0 0.0
  %207 = vmatprep.subr.mxu0 0.0
  %208 = vmatpush1.msra.mxu0 0.0
  %209 = vmatprep.mubr.f32.mxu0 0.0
  %210 = vmatmul.mubr.f32.gmra.mrb[0].mxu0 %v50
  %v211 = vpop.f32.mrb[0].mxu0
  %v212 = vadd.f32 0.0, %v211
  %v213 = vpop.f32.mrb[0].mxu0
  %214 = vmatprep.mubr.f32.mxu0 0.0
  %215 = vmatmul.mubr.f32.gmra.mrb[0].mxu0 %v53
  %v216 = vpop.f32.mrb[0].mxu0
  %v217 = vadd.f32 0.0, %v216
  %v218 = vpop.f32.mrb[0].mxu0
  %219 = vmatprep.mubr.f32.mxu0 0.0
  %220 = vmatmul.mubr.f32.gmra.mrb[0].mxu0 %v56
  %v221 = vpop.f32.mrb[0].mxu0
  %v222 = vadd.f32 0.0, %v221
  %v223 = vpop.f32.mrb[0].mxu0
  %224 = vmatprep.mubr.f32.mxu0 0.0
  %225 = vmatmul.mubr.f32.gmra.mrb[0].mxu0 %v59
  %v226 = vpop.f32.mrb[0].mxu0
  %v227 = vadd.f32 0.0, %v226
  %v228 = vpop.f32.mrb[0].mxu0
  %229 = vmatprep.mubr.f32.mxu0 0.0
  %230 = vmatmul.mubr.f32.gmra.mrb[0].mxu0 %v62
  %v231 = vpop.f32.mrb[0].mxu0
  %v232 = vadd.f32 0.0, %v231
  %v233 = vpop.f32.mrb[0].mxu0
  %234 = vmatprep.mubr.f32.mxu0 0.0
  %235 = vmatmul.mubr.f32.gmra.mrb[0].mxu0 %v65
  %v236 = vpop.f32.mrb[0].mxu0
  %v237 = vadd.f32 0.0, %v236
  %v238 = vpop.f32.mrb[0].mxu0
  %239 = vmatprep.mubr.f32.mxu0 0.0
  %240 = vmatmul.mubr.f32.gmra.mrb[0].mxu0 %v68
  %v241 = vpop.f32.mrb[0].mxu0
  %v242 = vadd.f32 0.0, %v241
  %v243 = vpop.f32.mrb[0].mxu0
  %244 = vmatprep.mubr.f32.mxu0 0.0
  %245 = vmatmul.mubr.f32.gmra.mrb[0].mxu0 %v71
  %v246 = vpop.f32.mrb[0].mxu0
  %v247 = vadd.f32 0.0, %v246
  %v248 = vpop.f32.mrb[0].mxu0
  %249 = vmatprep.mubr.f32.mxu0 0.0
  %250 = vmatmul.mubr.f32.gmra.mrb[0].mxu0 %v74
  %v251 = vpop.f32.mrb[0].mxu0
  %v252 = vadd.f32 0.0, %v251
  %v253 = vpop.f32.mrb[0].mxu0
  %254 = vmatprep.mubr.f32.mxu0 0.0
  %255 = vmatmul.mubr.f32.gmra.mrb[0].mxu0 %v77
  %v256 = vpop.f32.mrb[0].mxu0
  %v257 = vadd.f32 0.0, %v256
  %v258 = vpop.f32.mrb[0].mxu0
  %259 = vmatprep.mubr.f32.mxu0 0.0
  %260 = vmatmul.mubr.f32.gmra.mrb[0].mxu0 %v80
  %v261 = vpop.f32.mrb[0].mxu0
  %v262 = vadd.f32 0.0, %v261
  %v263 = vpop.f32.mrb[0].mxu0
  %264 = vmatprep.mubr.f32.mxu0 0.0
  %265 = vmatmul.mubr.f32.gmra.mrb[0].mxu0 %v83
  %v266 = vpop.f32.mrb[0].mxu0
  %v267 = vadd.f32 0.0, %v266
  %v268 = vpop.f32.mrb[0].mxu0
  %269 = vmatprep.mubr.f32.mxu0 0.0
  %270 = vmatmul.mubr.f32.gmra.mrb[0].mxu0 %v86
  %v271 = vpop.f32.mrb[0].mxu0
  %v272 = vadd.f32 0.0, %v271
  %v273 = vpop.f32.mrb[0].mxu0
  %274 = vmatprep.mubr.f32.mxu0 0.0
  %275 = vmatmul.mubr.f32.gmra.mrb[0].mxu0 %v89
  %v276 = vpop.f32.mrb[0].mxu0
  %v277 = vadd.f32 0.0, %v276
  %v278 = vpop.f32.mrb[0].mxu0
  %279 = vmatprep.mubr.f32.mxu0 0.0
  %280 = vmatmul.mubr.f32.gmra.mrb[0].mxu0 %v92
  %v281 = vpop.f32.mrb[0].mxu0
  %v282 = vadd.f32 0.0, %v281
  %v283 = vpop.f32.mrb[0].mxu0
  %284 = vmatprep.mubr.f32.mxu0 0.0
  %285 = vmatmul.mubr.f32.gmra.mrb[0].mxu0 %v95
  %v286 = vpop.f32.mrb[0].mxu0
  %v287 = vadd.f32 0.0, %v286
  %v288 = vpop.f32.mrb[0].mxu0
  %289 = vmatprep.mubr.f32.mxu0 0.0
  %290 = vmatmul.mubr.f32.gmra.mrb[0].mxu0 %v98
  %v291 = vpop.f32.mrb[0].mxu0
  %v292 = vadd.f32 0.0, %v291
  %v293 = vpop.f32.mrb[0].mxu0
  %294 = vmatprep.mubr.f32.mxu0 0.0
  %295 = vmatmul.mubr.f32.gmra.mrb[0].mxu0 %v101
  %v296 = vpop.f32.mrb[0].mxu0
  %v297 = vadd.f32 0.0, %v296
  %v298 = vpop.f32.mrb[0].mxu0
  %299 = vmatprep.mubr.f32.mxu0 0.0
  %300 = vmatmul.mubr.f32.gmra.mrb[0].mxu0 %v104
  %v301 = vpop.f32.mrb[0].mxu0
  %v302 = vadd.f32 0.0, %v301
  %v303 = vpop.f32.mrb[0].mxu0
  %304 = vmatprep.mubr.f32.mxu0 0.0
  %305 = vmatmul.mubr.f32.gmra.mrb[0].mxu0 %v107
  %v306 = vpop.f32.mrb[0].mxu0
  %v307 = vadd.f32 0.0, %v306
  %v308 = vpop.f32.mrb[0].mxu0
  %309 = vmatprep.mubr.f32.mxu0 0.0
  %310 = vmatmul.mubr.f32.gmra.mrb[0].mxu0 %v110
  %v311 = vpop.f32.mrb[0].mxu0
  %v312 = vadd.f32 0.0, %v311
  %v313 = vpop.f32.mrb[0].mxu0
  %314 = vmatprep.mubr.f32.mxu0 0.0
  %315 = vmatmul.mubr.f32.gmra.mrb[0].mxu0 %v113
  %v316 = vpop.f32.mrb[0].mxu0
  %v317 = vadd.f32 0.0, %v316
  %v318 = vpop.f32.mrb[0].mxu0
  %319 = vmatprep.mubr.f32.mxu0 0.0
  %320 = vmatmul.mubr.f32.gmra.mrb[0].mxu0 %v116
  %v321 = vpop.f32.mrb[0].mxu0
  %v322 = vadd.f32 0.0, %v321
  %v323 = vpop.f32.mrb[0].mxu0
  %324 = vmatprep.mubr.f32.mxu0 0.0
  %325 = vmatmul.mubr.f32.gmra.mrb[0].mxu0 %v119
  %v326 = vpop.f32.mrb[0].mxu0
  %v327 = vadd.f32 0.0, %v326
  %v328 = vpop.f32.mrb[0].mxu0
  %329 = vmatprep.mubr.f32.mxu0 0.0
  %330 = vmatmul.mubr.f32.gmra.mrb[0].mxu0 %v122
  %v331 = vpop.f32.mrb[0].mxu0
  %v332 = vadd.f32 0.0, %v331
  %v333 = vpop.f32.mrb[0].mxu0
  %334 = vmatprep.mubr.f32.mxu0 0.0
  %335 = vmatmul.mubr.f32.gmra.mrb[0].mxu0 %v125
  %v336 = vpop.f32.mrb[0].mxu0
  %v337 = vadd.f32 0.0, %v336
  %v338 = vpop.f32.mrb[0].mxu0
  %339 = vmatprep.mubr.f32.mxu0 0.0
  %340 = vmatmul.mubr.f32.gmra.mrb[0].mxu0 %v128
  %v341 = vpop.f32.mrb[0].mxu0
  %v342 = vadd.f32 0.0, %v341
  %v343 = vpop.f32.mrb[0].mxu0
  %344 = vmatprep.mubr.f32.mxu0 0.0
  %345 = vmatmul.mubr.f32.gmra.mrb[0].mxu0 %v131
  %v346 = vpop.f32.mrb[0].mxu0
  %v347 = vadd.f32 0.0, %v346
  %v348 = vpop.f32.mrb[0].mxu0
  %349 = vmatprep.mubr.f32.mxu0 0.0
  %350 = vmatmul.mubr.f32.gmra.mrb[0].mxu0 %v134
  %v351 = vpop.f32.mrb[0].mxu0
  %v352 = vadd.f32 0.0, %v351
  %v353 = vpop.f32.mrb[0].mxu0
  %354 = vmatprep.mubr.f32.mxu0 0.0
  %355 = vmatmul.mubr.f32.gmra.mrb[0].mxu0 %v137
  %v356 = vpop.f32.mrb[0].mxu0
  %v357 = vadd.f32 0.0, %v356
  %v358 = vpop.f32.mrb[0].mxu0
  %359 = vmatprep.mubr.f32.mxu0 0.0
  %360 = vmatmul.mubr.f32.gmra.mrb[0].mxu0 %v140
  %v361 = vpop.f32.mrb[0].mxu0
  %v362 = vadd.f32 0.0, %v361
  %v363 = vpop.f32.mrb[0].mxu0
  %364 = vmatprep.mubr.f32.mxu0 0.0
  %365 = vmatmul.mubr.f32.gmra.mrb[0].mxu0 %v143
  %v366 = vpop.f32.mrb[0].mxu0
  %v367 = vadd.f32 0.0, %v366
  %v368 = vpop.f32.mrb[0].mxu0
  %369 = vdwg.mxu0
  %402 = vrot.lane.b32.xlu0 %v212, 96
  %v403 = vpop.permute.xlu0 %402
  %404 = vrot.lane.b32.xlu0 %v217, 96
  %v405 = vpop.permute.xlu0 %404
  %406 = vrot.lane.b32.xlu0 %v222, 96
  %v407 = vpop.permute.xlu0 %406
  %408 = vrot.lane.b32.xlu0 %v227, 96
  %v409 = vpop.permute.xlu0 %408
  %410 = vrot.lane.b32.xlu0 %v232, 96
  %v411 = vpop.permute.xlu0 %410
  %412 = vrot.lane.b32.xlu0 %v237, 96
  %v413 = vpop.permute.xlu0 %412
  %414 = vrot.lane.b32.xlu0 %v242, 96
  %v415 = vpop.permute.xlu0 %414
  %416 = vrot.lane.b32.xlu0 %v247, 96
  %v417 = vpop.permute.xlu0 %416
  %418 = vrot.lane.b32.xlu0 %v252, 96
  %v419 = vpop.permute.xlu0 %418
  %420 = vrot.lane.b32.xlu0 %v257, 96
  %v421 = vpop.permute.xlu0 %420
  %422 = vrot.lane.b32.xlu0 %v262, 96
  %v423 = vpop.permute.xlu0 %422
  %424 = vrot.lane.b32.xlu0 %v267, 96
  %v425 = vpop.permute.xlu0 %424
  %426 = vrot.lane.b32.xlu0 %v272, 96
  %v427 = vpop.permute.xlu0 %426
  %428 = vrot.lane.b32.xlu0 %v277, 96
  %v429 = vpop.permute.xlu0 %428
  %430 = vrot.lane.b32.xlu0 %v282, 96
  %v431 = vpop.permute.xlu0 %430
  %432 = vrot.lane.b32.xlu0 %v287, 96
  %v433 = vpop.permute.xlu0 %432
  %434 = vrot.lane.b32.xlu0 %v292, 96
  %v435 = vpop.permute.xlu0 %434
  %436 = vrot.lane.b32.xlu0 %v297, 96
  %v437 = vpop.permute.xlu0 %436
  %438 = vrot.lane.b32.xlu0 %v302, 96
  %v439 = vpop.permute.xlu0 %438
  %440 = vrot.lane.b32.xlu0 %v307, 96
  %v441 = vpop.permute.xlu0 %440
  %442 = vrot.lane.b32.xlu0 %v312, 96
  %v443 = vpop.permute.xlu0 %442
  %444 = vrot.lane.b32.xlu0 %v317, 96
  %v445 = vpop.permute.xlu0 %444
  %446 = vrot.lane.b32.xlu0 %v322, 96
  %v447 = vpop.permute.xlu0 %446
  %448 = vrot.lane.b32.xlu0 %v327, 96
  %v449 = vpop.permute.xlu0 %448
  %450 = vrot.lane.b32.xlu0 %v332, 96
  %v451 = vpop.permute.xlu0 %450
  %452 = vrot.lane.b32.xlu0 %v337, 96
  %v453 = vpop.permute.xlu0 %452
  %454 = vrot.lane.b32.xlu0 %v342, 96
  %v455 = vpop.permute.xlu0 %454
  %456 = vrot.lane.b32.xlu0 %v347, 96
  %v457 = vpop.permute.xlu0 %456
  %458 = vrot.lane.b32.xlu0 %v352, 96
  %v459 = vpop.permute.xlu0 %458
  %460 = vrot.lane.b32.xlu0 %v357, 96
  %v461 = vpop.permute.xlu0 %460
  %462 = vrot.lane.b32.xlu0 %v362, 96
  %v463 = vpop.permute.xlu0 %462
  %464 = vrot.lane.b32.xlu0 %v367, 96
  %v465 = vpop.permute.xlu0 %464
  %vm498 = vcmask 7168
  %499 = vst.msk [vmem:[%s3] sm:$0xff] %vm498, %v403
  %500 = vst.msk [vmem:[%s3 + $0x8] sm:$0xff] %vm498, %v405
  %501 = vst.msk [vmem:[%s3 + $0x10] sm:$0xff] %vm498, %v407
  %502 = vst.msk [vmem:[%s3 + $0x18] sm:$0xff] %vm498, %v409
  %503 = vst.msk [vmem:[%s3 + $0x20] sm:$0xff] %vm498, %v411
  %504 = vst.msk [vmem:[%s3 + $0x28] sm:$0xff] %vm498, %v413
  %505 = vst.msk [vmem:[%s3 + $0x30] sm:$0xff] %vm498, %v415
  %506 = vst.msk [vmem:[%s3 + $0x38] sm:$0xff] %vm498, %v417
  %507 = vst.msk [vmem:[%s3 + $0x40] sm:$0xff] %vm498, %v419
  %508 = vst.msk [vmem:[%s3 + $0x48] sm:$0xff] %vm498, %v421
  %509 = vst.msk [vmem:[%s3 + $0x50] sm:$0xff] %vm498, %v423
  %510 = vst.msk [vmem:[%s3 + $0x58] sm:$0xff] %vm498, %v425
  %511 = vst.msk [vmem:[%s3 + $0x60] sm:$0xff] %vm498, %v427
  %512 = vst.msk [vmem:[%s3 + $0x68] sm:$0xff] %vm498, %v429
  %513 = vst.msk [vmem:[%s3 + $0x70] sm:$0xff] %vm498, %v431
  %514 = vst.msk [vmem:[%s3 + $0x78] sm:$0xff] %vm498, %v433
  %515 = vst.msk [vmem:[%s3 + $0x80] sm:$0xff] %vm498, %v435
  %516 = vst.msk [vmem:[%s3 + $0x88] sm:$0xff] %vm498, %v437
  %517 = vst.msk [vmem:[%s3 + $0x90] sm:$0xff] %vm498, %v439
  %518 = vst.msk [vmem:[%s3 + $0x98] sm:$0xff] %vm498, %v441
  %519 = vst.msk [vmem:[%s3 + $0xa0] sm:$0xff] %vm498, %v443
  %520 = vst.msk [vmem:[%s3 + $0xa8] sm:$0xff] %vm498, %v445
  %521 = vst.msk [vmem:[%s3 + $0xb0] sm:$0xff] %vm498, %v447
  %522 = vst.msk [vmem:[%s3 + $0xb8] sm:$0xff] %vm498, %v449
  %523 = vst.msk [vmem:[%s3 + $0xc0] sm:$0xff] %vm498, %v451
  %524 = vst.msk [vmem:[%s3 + $0xc8] sm:$0xff] %vm498, %v453
  %525 = vst.msk [vmem:[%s3 + $0xd0] sm:$0xff] %vm498, %v455
  %526 = vst.msk [vmem:[%s3 + $0xd8] sm:$0xff] %vm498, %v457
  %527 = vst.msk [vmem:[%s3 + $0xe0] sm:$0xff] %vm498, %v459
  %528 = vst.msk [vmem:[%s3 + $0xe8] sm:$0xff] %vm498, %v461
  %529 = vst.msk [vmem:[%s3 + $0xf0] sm:$0xff] %vm498, %v463
  %530 = vst.msk [vmem:[%s3 + $0xf8] sm:$0xff] %vm498, %v465
  %531 = vrot.lane.b32.xlu0 %v212, 95
  %v532 = vpop.permute.xlu0 %531
  %533 = vrot.lane.b32.xlu0 %v217, 95
  %v534 = vpop.permute.xlu0 %533
  %535 = vrot.lane.b32.xlu0 %v222, 95
  %v536 = vpop.permute.xlu0 %535
  %537 = vrot.lane.b32.xlu0 %v227, 95
  %v538 = vpop.permute.xlu0 %537
  %539 = vrot.lane.b32.xlu0 %v232, 95
  %v540 = vpop.permute.xlu0 %539
  %541 = vrot.lane.b32.xlu0 %v237, 95
  %v542 = vpop.permute.xlu0 %541
  %543 = vrot.lane.b32.xlu0 %v242, 95
  %v544 = vpop.permute.xlu0 %543
  %545 = vrot.lane.b32.xlu0 %v247, 95
  %v546 = vpop.permute.xlu0 %545
  %547 = vrot.lane.b32.xlu0 %v252, 95
  %v548 = vpop.permute.xlu0 %547
  %549 = vrot.lane.b32.xlu0 %v257, 95
  %v550 = vpop.permute.xlu0 %549
  %551 = vrot.lane.b32.xlu0 %v262, 95
  %v552 = vpop.permute.xlu0 %551
  %553 = vrot.lane.b32.xlu0 %v267, 95
  %v554 = vpop.permute.xlu0 %553
  %555 = vrot.lane.b32.xlu0 %v272, 95
  %v556 = vpop.permute.xlu0 %555
  %557 = vrot.lane.b32.xlu0 %v277, 95
  %v558 = vpop.permute.xlu0 %557
  %559 = vrot.lane.b32.xlu0 %v282, 95
  %v560 = vpop.permute.xlu0 %559
  %561 = vrot.lane.b32.xlu0 %v287, 95
  %v562 = vpop.permute.xlu0 %561
  %563 = vrot.lane.b32.xlu0 %v292, 95
  %v564 = vpop.permute.xlu0 %563
  %565 = vrot.lane.b32.xlu0 %v297, 95
  %v566 = vpop.permute.xlu0 %565
  %567 = vrot.lane.b32.xlu0 %v302, 95
  %v568 = vpop.permute.xlu0 %567
  %569 = vrot.lane.b32.xlu0 %v307, 95
  %v570 = vpop.permute.xlu0 %569
  %571 = vrot.lane.b32.xlu0 %v312, 95
  %v572 = vpop.permute.xlu0 %571
  %573 = vrot.lane.b32.xlu0 %v317, 95
  %v574 = vpop.permute.xlu0 %573
  %575 = vrot.lane.b32.xlu0 %v322, 95
  %v576 = vpop.permute.xlu0 %575
  %577 = vrot.lane.b32.xlu0 %v327, 95
  %v578 = vpop.permute.xlu0 %577
  %579 = vrot.lane.b32.xlu0 %v332, 95
  %v580 = vpop.permute.xlu0 %579
  %581 = vrot.lane.b32.xlu0 %v337, 95
  %v582 = vpop.permute.xlu0 %581
  %583 = vrot.lane.b32.xlu0 %v342, 95
  %v584 = vpop.permute.xlu0 %583
  %585 = vrot.lane.b32.xlu0 %v347, 95
  %v586 = vpop.permute.xlu0 %585
  %587 = vrot.lane.b32.xlu0 %v352, 95
  %v588 = vpop.permute.xlu0 %587
  %589 = vrot.lane.b32.xlu0 %v357, 95
  %v590 = vpop.permute.xlu0 %589
  %591 = vrot.lane.b32.xlu0 %v362, 95
  %v592 = vpop.permute.xlu0 %591
  %593 = vrot.lane.b32.xlu0 %v367, 95
  %v594 = vpop.permute.xlu0 %593
  %627 = vst.msk [vmem:[%s4] sm:$0xff] %vm498, %v532
  %628 = vst.msk [vmem:[%s4 + $0x8] sm:$0xff] %vm498, %v534
  %629 = vst.msk [vmem:[%s4 + $0x10] sm:$0xff] %vm498, %v536
  %630 = vst.msk [vmem:[%s4 + $0x18] sm:$0xff] %vm498, %v538
  %631 = vst.msk [vmem:[%s4 + $0x20] sm:$0xff] %vm498, %v540
  %632 = vst.msk [vmem:[%s4 + $0x28] sm:$0xff] %vm498, %v542
  %633 = vst.msk [vmem:[%s4 + $0x30] sm:$0xff] %vm498, %v544
  %634 = vst.msk [vmem:[%s4 + $0x38] sm:$0xff] %vm498, %v546
  %635 = vst.msk [vmem:[%s4 + $0x40] sm:$0xff] %vm498, %v548
  %636 = vst.msk [vmem:[%s4 + $0x48] sm:$0xff] %vm498, %v550
  %637 = vst.msk [vmem:[%s4 + $0x50] sm:$0xff] %vm498, %v552
  %638 = vst.msk [vmem:[%s4 + $0x58] sm:$0xff] %vm498, %v554
  %639 = vst.msk [vmem:[%s4 + $0x60] sm:$0xff] %vm498, %v556
  %640 = vst.msk [vmem:[%s4 + $0x68] sm:$0xff] %vm498, %v558
  %641 = vst.msk [vmem:[%s4 + $0x70] sm:$0xff] %vm498, %v560
  %642 = vst.msk [vmem:[%s4 + $0x78] sm:$0xff] %vm498, %v562
  %643 = vst.msk [vmem:[%s4 + $0x80] sm:$0xff] %vm498, %v564
  %644 = vst.msk [vmem:[%s4 + $0x88] sm:$0xff] %vm498, %v566
  %645 = vst.msk [vmem:[%s4 + $0x90] sm:$0xff] %vm498, %v568
  %646 = vst.msk [vmem:[%s4 + $0x98] sm:$0xff] %vm498, %v570
  %647 = vst.msk [vmem:[%s4 + $0xa0] sm:$0xff] %vm498, %v572
  %648 = vst.msk [vmem:[%s4 + $0xa8] sm:$0xff] %vm498, %v574
  %649 = vst.msk [vmem:[%s4 + $0xb0] sm:$0xff] %vm498, %v576
  %650 = vst.msk [vmem:[%s4 + $0xb8] sm:$0xff] %vm498, %v578
  %651 = vst.msk [vmem:[%s4 + $0xc0] sm:$0xff] %vm498, %v580
  %652 = vst.msk [vmem:[%s4 + $0xc8] sm:$0xff] %vm498, %v582
  %653 = vst.msk [vmem:[%s4 + $0xd0] sm:$0xff] %vm498, %v584
  %654 = vst.msk [vmem:[%s4 + $0xd8] sm:$0xff] %vm498, %v586
  %655 = vst.msk [vmem:[%s4 + $0xe0] sm:$0xff] %vm498, %v588
  %656 = vst.msk [vmem:[%s4 + $0xe8] sm:$0xff] %vm498, %v590
  %657 = vst.msk [vmem:[%s4 + $0xf0] sm:$0xff] %vm498, %v592
  %658 = vst.msk [vmem:[%s4 + $0xf8] sm:$0xff] %vm498, %v594
  %vm659 = vcmask 261120
  %v660 = vsel %vm659, %v212, 1.0
  %v661 = vsel %vm659, %v217, 1.0
  %v662 = vsel %vm659, %v222, 1.0
  %v663 = vsel %vm659, %v227, 1.0
  %v664 = vsel %vm659, %v232, 1.0
  %v665 = vsel %vm659, %v237, 1.0
  %v666 = vsel %vm659, %v242, 1.0
  %v667 = vsel %vm659, %v247, 1.0
  %v668 = vsel %vm659, %v252, 1.0
  %v669 = vsel %vm659, %v257, 1.0
  %v670 = vsel %vm659, %v262, 1.0
  %v671 = vsel %vm659, %v267, 1.0
  %v672 = vsel %vm659, %v272, 1.0
  %v673 = vsel %vm659, %v277, 1.0
  %v674 = vsel %vm659, %v282, 1.0
  %v675 = vsel %vm659, %v287, 1.0
  %v676 = vsel %vm659, %v292, 1.0
  %v677 = vsel %vm659, %v297, 1.0
  %v678 = vsel %vm659, %v302, 1.0
  %v679 = vsel %vm659, %v307, 1.0
  %v680 = vsel %vm659, %v312, 1.0
  %v681 = vsel %vm659, %v317, 1.0
  %v682 = vsel %vm659, %v322, 1.0
  %v683 = vsel %vm659, %v327, 1.0
  %v684 = vsel %vm659, %v332, 1.0
  %v685 = vsel %vm659, %v337, 1.0
  %v686 = vsel %vm659, %v342, 1.0
  %v687 = vsel %vm659, %v347, 1.0
  %v688 = vsel %vm659, %v352, 1.0
  %v689 = vsel %vm659, %v357, 1.0
  %v690 = vsel %vm659, %v362, 1.0
  %v691 = vsel %vm659, %v367, 1.0
  %v692 = vpack.c.bf16 %v661, %v660
  %v693 = vpack.c.bf16 %v663, %v662
  %v694 = vpack.c.bf16 %v665, %v664
  %v695 = vpack.c.bf16 %v667, %v666
  %v696 = vpack.c.bf16 %v669, %v668
  %v697 = vpack.c.bf16 %v671, %v670
  %v698 = vpack.c.bf16 %v673, %v672
  %v699 = vpack.c.bf16 %v675, %v674
  %v700 = vpack.c.bf16 %v677, %v676
  %v701 = vpack.c.bf16 %v679, %v678
  %v702 = vpack.c.bf16 %v681, %v680
  %v703 = vpack.c.bf16 %v683, %v682
  %v704 = vpack.c.bf16 %v685, %v684
  %v705 = vpack.c.bf16 %v687, %v686
  %v706 = vpack.c.bf16 %v689, %v688
  %v707 = vpack.c.bf16 %v691, %v690
  %v724 = vunpack.c.l.b16 %v692
  %v725 = vunpack.c.h.b16 %v692
  %v726 = vunpack.c.l.b16 %v693
  %v727 = vunpack.c.h.b16 %v693
  %v728 = vunpack.c.l.b16 %v694
  %v729 = vunpack.c.h.b16 %v694
  %v730 = vunpack.c.l.b16 %v695
  %v731 = vunpack.c.h.b16 %v695
  %v732 = vunpack.c.l.b16 %v696
  %v733 = vunpack.c.h.b16 %v696
  %v734 = vunpack.c.l.b16 %v697
  %v735 = vunpack.c.h.b16 %v697
  %v736 = vunpack.c.l.b16 %v698
  %v737 = vunpack.c.h.b16 %v698
  %v738 = vunpack.c.l.b16 %v699
  %v739 = vunpack.c.h.b16 %v699
  %v740 = vunpack.c.l.b16 %v700
  %v741 = vunpack.c.h.b16 %v700
  %v742 = vunpack.c.l.b16 %v701
  %v743 = vunpack.c.h.b16 %v701
  %v744 = vunpack.c.l.b16 %v702
  %v745 = vunpack.c.h.b16 %v702
  %v746 = vunpack.c.l.b16 %v703
  %v747 = vunpack.c.h.b16 %v703
  %v748 = vunpack.c.l.b16 %v704
  %v749 = vunpack.c.h.b16 %v704
  %v750 = vunpack.c.l.b16 %v705
  %v751 = vunpack.c.h.b16 %v705
  %v752 = vunpack.c.l.b16 %v706
  %v753 = vunpack.c.h.b16 %v706
  %v754 = vunpack.c.l.b16 %v707
  %v755 = vunpack.c.h.b16 %v707
  %v756 = vpack.c.b16 %v724, %v724
  %v757 = vpack.c.b16 %v725, %v725
  %v758 = vpack.c.b16 %v726, %v726
  %v759 = vpack.c.b16 %v727, %v727
  %v760 = vpack.c.b16 %v728, %v728
  %v761 = vpack.c.b16 %v729, %v729
  %v762 = vpack.c.b16 %v730, %v730
  %v763 = vpack.c.b16 %v731, %v731
  %v764 = vpack.c.b16 %v732, %v732
  %v765 = vpack.c.b16 %v733, %v733
  %v766 = vpack.c.b16 %v734, %v734
  %v767 = vpack.c.b16 %v735, %v735
  %v768 = vpack.c.b16 %v736, %v736
  %v769 = vpack.c.b16 %v737, %v737
  %v770 = vpack.c.b16 %v738, %v738
  %v771 = vpack.c.b16 %v739, %v739
  %v772 = vpack.c.b16 %v740, %v740
  %v773 = vpack.c.b16 %v741, %v741
  %v774 = vpack.c.b16 %v742, %v742
  %v775 = vpack.c.b16 %v743, %v743
  %v776 = vpack.c.b16 %v744, %v744
  %v777 = vpack.c.b16 %v745, %v745
  %v778 = vpack.c.b16 %v746, %v746
  %v779 = vpack.c.b16 %v747, %v747
  %v780 = vpack.c.b16 %v748, %v748
  %v781 = vpack.c.b16 %v749, %v749
  %v782 = vpack.c.b16 %v750, %v750
  %v783 = vpack.c.b16 %v751, %v751
  %v784 = vpack.c.b16 %v752, %v752
  %v785 = vpack.c.b16 %v753, %v753
  %v786 = vpack.c.b16 %v754, %v754
  %v787 = vpack.c.b16 %v755, %v755
  %vm820 = vcmask 265216
  %821 = vst.msk [vmem:[%s2] sm:$0xf] %vm820, %v756
  %822 = vst.msk [vmem:[%s2 + $0x4] sm:$0xf] %vm820, %v757
  %823 = vst.msk [vmem:[%s2 + $0x8] sm:$0xf] %vm820, %v758
  %824 = vst.msk [vmem:[%s2 + $0xc] sm:$0xf] %vm820, %v759
  %825 = vst.msk [vmem:[%s2 + $0x10] sm:$0xf] %vm820, %v760
  %826 = vst.msk [vmem:[%s2 + $0x14] sm:$0xf] %vm820, %v761
  %827 = vst.msk [vmem:[%s2 + $0x18] sm:$0xf] %vm820, %v762
  %828 = vst.msk [vmem:[%s2 + $0x1c] sm:$0xf] %vm820, %v763
  %829 = vst.msk [vmem:[%s2 + $0x20] sm:$0xf] %vm820, %v764
  %830 = vst.msk [vmem:[%s2 + $0x24] sm:$0xf] %vm820, %v765
  %831 = vst.msk [vmem:[%s2 + $0x28] sm:$0xf] %vm820, %v766
  %832 = vst.msk [vmem:[%s2 + $0x2c] sm:$0xf] %vm820, %v767
  %833 = vst.msk [vmem:[%s2 + $0x30] sm:$0xf] %vm820, %v768
  %834 = vst.msk [vmem:[%s2 + $0x34] sm:$0xf] %vm820, %v769
  %835 = vst.msk [vmem:[%s2 + $0x38] sm:$0xf] %vm820, %v770
  %836 = vst.msk [vmem:[%s2 + $0x3c] sm:$0xf] %vm820, %v771
  %837 = vst.msk [vmem:[%s2 + $0x40] sm:$0xf] %vm820, %v772
  %838 = vst.msk [vmem:[%s2 + $0x44] sm:$0xf] %vm820, %v773
  %839 = vst.msk [vmem:[%s2 + $0x48] sm:$0xf] %vm820, %v774
  %840 = vst.msk [vmem:[%s2 + $0x4c] sm:$0xf] %vm820, %v775
  %841 = vst.msk [vmem:[%s2 + $0x50] sm:$0xf] %vm820, %v776
  %842 = vst.msk [vmem:[%s2 + $0x54] sm:$0xf] %vm820, %v777
  %843 = vst.msk [vmem:[%s2 + $0x58] sm:$0xf] %vm820, %v778
  %844 = vst.msk [vmem:[%s2 + $0x5c] sm:$0xf] %vm820, %v779
  %845 = vst.msk [vmem:[%s2 + $0x60] sm:$0xf] %vm820, %v780
  %846 = vst.msk [vmem:[%s2 + $0x64] sm:$0xf] %vm820, %v781
  %847 = vst.msk [vmem:[%s2 + $0x68] sm:$0xf] %vm820, %v782
  %848 = vst.msk [vmem:[%s2 + $0x6c] sm:$0xf] %vm820, %v783
  %849 = vst.msk [vmem:[%s2 + $0x70] sm:$0xf] %vm820, %v784
  %850 = vst.msk [vmem:[%s2 + $0x74] sm:$0xf] %vm820, %v785
  %851 = vst.msk [vmem:[%s2 + $0x78] sm:$0xf] %vm820, %v786
  %852 = vst.msk [vmem:[%s2 + $0x7c] sm:$0xf] %vm820, %v787
  // Predicated region
  $region10: #{tpu_custom_call.1} parent=0 // pred_check
    _
  $region11: #{tpu_custom_call.1} parent=0 // pred_check_branch
    %854 = sbr.rel (0) target = $region13
  $region12: #{tpu_custom_call.1} parent=0 // pred_region
    _
  $region13: #{tpu_custom_call.1} parent=0 // pred_fallthru
    _
  // Predicated region
  $region14: #{tpu_custom_call.1} parent=0 // pred_check
    _
  $region15: #{tpu_custom_call.1} parent=0 // pred_check_branch
    %856 = sbr.rel (0) target = $region17
  $region16: #{tpu_custom_call.1} parent=0 // pred_region
    _
  $region17: #{tpu_custom_call.1} parent=0 // pred_fallthru
    _
  // Predicated region
  $region18: #{tpu_custom_call.1} parent=0 // pred_check
    _
  $region19: #{tpu_custom_call.1} parent=0 // pred_check_branch
    %858 = sbr.rel (0) target = $region21
  $region20: #{tpu_custom_call.1} parent=0 // pred_region
    _
  $region21: #{tpu_custom_call.1} parent=0 // pred_fallthru
    _
  // Predicated region
  $region22: #{tpu_custom_call.1} parent=0 // pred_check
    _
  $region23: #{tpu_custom_call.1} parent=0 // pred_check_branch
    %860 = sbr.rel (0) target = $region25
  $region24: #{tpu_custom_call.1} parent=0 // pred_region
    _
  $region25: #{tpu_custom_call.1} parent=0 // pred_fallthru
    _
  // Predicated region
  $region26: #{tpu_custom_call.1} parent=0 // pred_check
    _
  $region27: #{tpu_custom_call.1} parent=0 // pred_check_branch
    %862 = sbr.rel (0) target = $region29
  $region28: #{tpu_custom_call.1} parent=0 // pred_region
    _
  $region29: #{tpu_custom_call.1} parent=0 // pred_fallthru
    _
  // Predicated region
  $region30: #{tpu_custom_call.1} parent=0 // pred_check
    _
  $region31: #{tpu_custom_call.1} parent=0 // pred_check_branch
    %864 = sbr.rel (0) target = $region33
  $region32: #{tpu_custom_call.1} parent=0 // pred_region
    _
  $region33: #{tpu_custom_call.1} parent=0 // pred_fallthru
    _

</llo_original>
